<compile_context>
chip_gen: v5e
topology: v5e:2x2
jax: 0.10.0
libtpu: 0.0.40
codegen_flags: <defaults>
</compile_context>

<pallas_src>
import math
from functools import partial

import jax
import jax.numpy as jnp
from jax import lax
from jax.experimental import pallas as pl
from jax.experimental.pallas import tpu as pltpu

LN_EPS = 1e-5  # nn.LayerNorm default


def _layernorm(u, g):
    # LayerNorm over the embedding dim, no bias, elementwise affine weight g (1, D).
    mean = jnp.mean(u, axis=-1, keepdims=True)
    var = jnp.mean(jnp.square(u - mean), axis=-1, keepdims=True)
    return (u - mean) * lax.rsqrt(var + LN_EPS) * g


def _erf_poly(z):
    # Abramowitz & Stegun 7.1.26 rational approximation, |error| < 1.5e-7
    # (f32-level exact).  Used instead of lax.erf to guarantee Mosaic lowering.
    t = 1.0 / (1.0 + 0.3275911 * jnp.abs(z))
    poly = t * (0.254829592 + t * (-0.284496736 + t * (1.421413741
               + t * (-1.453152027 + t * 1.061405429))))
    r = 1.0 - poly * jnp.exp(-z * z)
    return jnp.where(z >= 0.0, r, -r)


def _gelu_exact(u):
    # Exact (erf-based) GELU, matching PyTorch nn.GELU() default.
    return 0.5 * u * (1.0 + _erf_poly(u * (1.0 / math.sqrt(2.0))))


def transformer_block_kernel(x_ref, g1_ref, wqkv_ref, wo_ref, g2_ref, w1_ref, w2_ref,
                             o_ref, *, scale, n_head):
    BB, S, D = x_ref.shape              # batches-per-step, seq, embed
    H = n_head

    x = x_ref[...].reshape(BB * S, D)   # leading-dim collapse (minor dim unchanged)
    g1 = g1_ref[...]                    # (1, D)

    # ---- Attention -------------------------------------------------------
    xn = _layernorm(x, g1)              # (BB*S, D), shared by all heads / batches

    # One wide fused QKV projection: (BB*S, D) x (D, 3*H*D) -> (BB*S, 3*H*D).
    qkv = jnp.dot(xn, wqkv_ref[...], preferred_element_type=jnp.float32)

    wo = wo_ref[...]                    # (H*D, D), resident in VMEM
    attn_parts = []
    for b in range(BB):                 # static unroll (BB<=2)
        rows = slice(b * S, (b + 1) * S)
        heads = []
        for h in range(H):              # static unroll (H=2)
            q = qkv[rows, (0 * H + h) * D:(0 * H + h + 1) * D]   # (S, D)
            k = qkv[rows, (1 * H + h) * D:(1 * H + h + 1) * D]
            v = qkv[rows, (2 * H + h) * D:(2 * H + h + 1) * D]

            # q . k^T without materializing the transpose (contract last dims).
            s = lax.dot_general(q, k, (((1,), (1,)), ((), ())),
                                preferred_element_type=jnp.float32) * scale  # (S, S)

            # Manual softmax: rowmax subtract, exp, EUP approx reciprocal of rowsum.
            s = s - jnp.max(s, axis=-1, keepdims=True)
            e = jnp.exp(s)
            p = e * pl.reciprocal(jnp.sum(e, axis=-1, keepdims=True), approx=True)
            # TODO(synk): use_nto=False causal bias, rbf/laplacian kernel fns and
            # dropout>0 are not exercised in this config.

            heads.append(jnp.dot(p, v, preferred_element_type=jnp.float32))  # (S, D)

        # Concatenate head outputs along lanes and apply W_o once: (S, H*D)x(H*D, D).
        o_cat = jnp.concatenate(heads, axis=-1)
        attn_parts.append(jnp.dot(o_cat, wo, preferred_element_type=jnp.float32))

    attn_out = (attn_parts[0] if BB == 1
                else jnp.concatenate(attn_parts, axis=0))       # (BB*S, D)

    x1 = x + attn_out                   # residual 1

    # ---- Feed-forward ----------------------------------------------------
    g2 = g2_ref[...]
    xn2 = _layernorm(x1, g2)
    hid = jnp.dot(xn2, w1_ref[...], preferred_element_type=jnp.float32)  # (BB*S, 128)
    hid = _gelu_exact(hid)
    ff = jnp.dot(hid, w2_ref[...], preferred_element_type=jnp.float32)   # (BB*S, D)

    y = x1 + ff                         # residual 2
    o_ref[...] = y.reshape(BB, S, D)    # single store per grid step


def _batches_per_step(B):
    # v7x has 2 TensorCores per chip -> keep the parallel batch grid there.
    # Single-TC chips (v5e/v6e): fold the whole batch into one grid step so we
    # pay the fixed per-step pipeline overhead (~0.35 us) only once.
    try:
        kind = jax.devices()[0].device_kind.lower()
    except Exception:
        kind = ""
    return 1 if "7" in kind else B


def transformer_block_forward(x, e, p, g1, wq, wk, wv, wo, g2, w1, w2):
    # e, p mirror the PyTorch signature; unused when use_ppe=False.
    del e, p
    B, S, D = x.shape
    H = wq.shape[0]
    DFF = w1.shape[1]
    scale = 1.0 / math.sqrt(D)

    # Fuse Q/K/V weights into one (D, 3*H*D) matrix: column block (j*H + h) is
    # W_{q,k,v}[h] for j in {0:q, 1:k, 2:v}.
    wq_flat = wq.transpose(1, 0, 2).reshape(D, H * D)
    wk_flat = wk.transpose(1, 0, 2).reshape(D, H * D)
    wv_flat = wv.transpose(1, 0, 2).reshape(D, H * D)
    w_qkv = jnp.concatenate([wq_flat, wk_flat, wv_flat], axis=1)     # (D, 3*H*D)

    BB = _batches_per_step(B)           # batches handled per grid step
    assert B % BB == 0

    kernel = partial(transformer_block_kernel, scale=scale, n_head=H)
    return pl.pallas_call(
        kernel,
        out_shape=jax.ShapeDtypeStruct((B, S, D), jnp.float32),
        grid=(B // BB,),
        in_specs=[
            pl.BlockSpec((BB, S, D), lambda i: (i, 0, 0)),        # x
            pl.BlockSpec((1, D), lambda i: (0, 0)),               # ln_x weight
            pl.BlockSpec((D, 3 * H * D), lambda i: (0, 0)),       # fused W_qkv
            pl.BlockSpec((H * D, D), lambda i: (0, 0)),           # W_o
            pl.BlockSpec((1, D), lambda i: (0, 0)),               # ff LayerNorm weight
            pl.BlockSpec((D, DFF), lambda i: (0, 0)),             # ff W1
            pl.BlockSpec((DFF, D), lambda i: (0, 0)),             # ff W2
        ],
        out_specs=pl.BlockSpec((BB, S, D), lambda i: (i, 0, 0)),
        compiler_params=pltpu.CompilerParams(
            dimension_semantics=("parallel",)),
    )(x, g1, w_qkv, wo, g2, w1, w2)


def transformer_block_reference(x, g1, wq, wk, wv, wo, g2, w1, w2):
    """Plain-JAX mirror of the PyTorch forward for verification."""
    B, S, D = x.shape
    H = wq.shape[0]

    def ln(u, g):
        m = jnp.mean(u, axis=-1, keepdims=True)
        v = jnp.mean(jnp.square(u - m), axis=-1, keepdims=True)
        return (u - m) / jnp.sqrt(v + LN_EPS) * g.reshape(-1)

    xn = ln(x, g1)
    xh = jnp.broadcast_to(xn[:, None], (B, H, S, D))
    Q = jnp.einsum('bhsd,hde->bhse', xh, wq)
    K = jnp.einsum('bhsd,hde->bhse', xh, wk)
    V = jnp.einsum('bhsd,hde->bhse', xh, wv)
    scores = jax.nn.softmax(
        jnp.einsum('bhqd,bhkd->bhqk', Q, K) / math.sqrt(D), axis=-1)
    out = jnp.einsum('bhqk,bhkd->bhqd', scores, V)
    out = jnp.transpose(out, (0, 2, 1, 3)).reshape(B, S, H * D)
    x1 = x + out @ wo
    hid = jax.nn.gelu(ln(x1, g2) @ w1, approximate=False)
    return x1 + hid @ w2


if __name__ == "__main__":
    B, S, D, H, DFF, n_layer = 2, 8, 32, 2, 128, 2

    key = jax.random.PRNGKey(0)
    kx, ke, kp, kq, kk, kv, ko, k1, k2 = jax.random.split(key, 9)

    x = jax.random.normal(kx, (B, S, D), dtype=jnp.float32)
    e = jax.random.normal(ke, (B, S, D), dtype=jnp.float32)   # unused (use_ppe=False)
    p = jax.random.normal(kp, (B, S, D), dtype=jnp.float32)   # unused (use_ppe=False)

    # Deterministic parameter init matching _init_weights (normal, std=0.02).
    wq = 0.02 * jax.random.normal(kq, (H, D, D), dtype=jnp.float32)
    wk = 0.02 * jax.random.normal(kk, (H, D, D), dtype=jnp.float32)
    wv = 0.02 * jax.random.normal(kv, (H, D, D), dtype=jnp.float32)
    wo = (0.02 / math.sqrt(2 * n_layer)) * jax.random.normal(
        ko, (H * D, D), dtype=jnp.float32)
    w1 = 0.02 * jax.random.normal(k1, (D, DFF), dtype=jnp.float32)   # ff[1].weight.T
    w2 = 0.02 * jax.random.normal(k2, (DFF, D), dtype=jnp.float32)   # ff[3].weight.T
    g1 = jnp.ones((1, D), dtype=jnp.float32)   # ln_x.weight (bias=False)
    g2 = jnp.ones((1, D), dtype=jnp.float32)   # ff LayerNorm weight (bias=False)

    out = transformer_block_forward(x, e, p, g1, wq, wk, wv, wo, g2, w1, w2)
    out = jax.block_until_ready(out)

    ref = transformer_block_reference(x, g1, wq, wk, wv, wo, g2, w1, w2)
    assert out.shape == (B, S, D)
    # atol slightly above f32 noise to absorb the EUP approx-reciprocal in softmax.
    assert jnp.allclose(out, ref, rtol=1e-4, atol=2e-5), "mismatch vs reference"

    print("KERNEL_OK")
</pallas_src>

<mosaic_0001>
module attributes {stable_mosaic.version = 11 : i64} {
  func.func @transformer_block_kernel(%arg0: i32, %arg1: memref<2x8x32xf32, #tpu.memory_space<vmem>>, %arg2: memref<1x32xf32, #tpu.memory_space<vmem>>, %arg3: memref<32x192xf32, #tpu.memory_space<vmem>>, %arg4: memref<64x32xf32, #tpu.memory_space<vmem>>, %arg5: memref<1x32xf32, #tpu.memory_space<vmem>>, %arg6: memref<32x128xf32, #tpu.memory_space<vmem>>, %arg7: memref<128x32xf32, #tpu.memory_space<vmem>>, %arg8: memref<2x8x32xf32, #tpu.memory_space<vmem>>) attributes {dimension_semantics = [#tpu.dimension_semantics<parallel>], iteration_bounds = array<i64: 1>, scalar_prefetch = 0 : i64, scratch_operands = 0 : i64, tpu.core_type = #tpu.core_type<tc>, window_params = [{transform_indices = @transform_0, window_bounds = array<i64: 2, 8, 32>}, {pipeline_mode = #tpu.pipeline_mode<synchronous>, transform_indices = @transform_1, window_bounds = array<i64: 1, 32>}, {pipeline_mode = #tpu.pipeline_mode<synchronous>, transform_indices = @transform_2, window_bounds = array<i64: 32, 192>}, {pipeline_mode = #tpu.pipeline_mode<synchronous>, transform_indices = @transform_3, window_bounds = array<i64: 64, 32>}, {pipeline_mode = #tpu.pipeline_mode<synchronous>, transform_indices = @transform_4, window_bounds = array<i64: 1, 32>}, {pipeline_mode = #tpu.pipeline_mode<synchronous>, transform_indices = @transform_5, window_bounds = array<i64: 32, 128>}, {pipeline_mode = #tpu.pipeline_mode<synchronous>, transform_indices = @transform_6, window_bounds = array<i64: 128, 32>}, {transform_indices = @transform_7, window_bounds = array<i64: 2, 8, 32>}]} {
    %c0 = arith.constant 0 : index
    %c0_0 = arith.constant 0 : index
    %c0_1 = arith.constant 0 : index
    %0 = vector.load %arg1[%c0, %c0_0, %c0_1] : memref<2x8x32xf32, #tpu.memory_space<vmem>>, vector<2x8x32xf32>
    %1 = vector.shape_cast %0 : vector<2x8x32xf32> to vector<16x32xf32>
    %c0_2 = arith.constant 0 : index
    %c0_3 = arith.constant 0 : index
    %2 = vector.load %arg2[%c0_2, %c0_3] : memref<1x32xf32, #tpu.memory_space<vmem>>, vector<1x32xf32>
    %cst = arith.constant dense<0.000000e+00> : vector<16xf32>
    %3 = vector.multi_reduction <add>, %1, %cst [1] : vector<16x32xf32> to vector<16xf32>
    %4 = vector.shape_cast %3 : vector<16xf32> to vector<16x1xf32>
    %cst_4 = arith.constant 3.200000e+01 : f32
    %5 = vector.broadcast %cst_4 : f32 to vector<16x1xf32>
    %6 = arith.divf %4, %5 : vector<16x1xf32>
    %7 = vector.broadcast %6 : vector<16x1xf32> to vector<16x32xf32>
    %8 = arith.subf %1, %7 : vector<16x32xf32>
    %9 = arith.mulf %8, %8 : vector<16x32xf32>
    %cst_5 = arith.constant dense<0.000000e+00> : vector<16xf32>
    %10 = vector.multi_reduction <add>, %9, %cst_5 [1] : vector<16x32xf32> to vector<16xf32>
    %11 = vector.shape_cast %10 : vector<16xf32> to vector<16x1xf32>
    %cst_6 = arith.constant 3.200000e+01 : f32
    %12 = vector.broadcast %cst_6 : f32 to vector<16x1xf32>
    %13 = arith.divf %11, %12 : vector<16x1xf32>
    %14 = vector.broadcast %6 : vector<16x1xf32> to vector<16x32xf32>
    %15 = arith.subf %1, %14 : vector<16x32xf32>
    %cst_7 = arith.constant 9.99999974E-6 : f32
    %16 = vector.broadcast %cst_7 : f32 to vector<16x1xf32>
    %17 = arith.addf %13, %16 : vector<16x1xf32>
    %18 = math.rsqrt %17 : vector<16x1xf32>
    %19 = vector.broadcast %18 : vector<16x1xf32> to vector<16x32xf32>
    %20 = arith.mulf %15, %19 : vector<16x32xf32>
    %21 = vector.broadcast %2 : vector<1x32xf32> to vector<16x32xf32>
    %22 = arith.mulf %20, %21 : vector<16x32xf32>
    %c0_8 = arith.constant 0 : index
    %c0_9 = arith.constant 0 : index
    %23 = vector.load %arg3[%c0_8, %c0_9] : memref<32x192xf32, #tpu.memory_space<vmem>>, vector<32x192xf32>
    %cst_10 = arith.constant dense<0.000000e+00> : vector<16x192xf32>
    %24 = tpu.matmul %22, %23, %cst_10 {dimension_numbers = #tpu.dot_dimension_numbers<[1], [0], [0], [1], [0, 0, 1, 1], [], []>} : vector<16x32xf32>, vector<32x192xf32>, vector<16x192xf32> -> vector<16x192xf32>
    %c0_11 = arith.constant 0 : index
    %c0_12 = arith.constant 0 : index
    %25 = vector.load %arg4[%c0_11, %c0_12] : memref<64x32xf32, #tpu.memory_space<vmem>>, vector<64x32xf32>
    %26 = vector.extract_strided_slice %24 {offsets = [0, 0], sizes = [8, 32], strides = [1, 1]} : vector<16x192xf32> to vector<8x32xf32>
    %27 = vector.extract_strided_slice %24 {offsets = [0, 64], sizes = [8, 32], strides = [1, 1]} : vector<16x192xf32> to vector<8x32xf32>
    %28 = vector.extract_strided_slice %24 {offsets = [0, 128], sizes = [8, 32], strides = [1, 1]} : vector<16x192xf32> to vector<8x32xf32>
    %cst_13 = arith.constant dense<0.000000e+00> : vector<8x8xf32>
    %29 = tpu.matmul %26, %27, %cst_13 {dimension_numbers = #tpu.dot_dimension_numbers<[1], [1], [0], [0], [0, 0, 1, 0], [], []>} : vector<8x32xf32>, vector<8x32xf32>, vector<8x8xf32> -> vector<8x8xf32>
    %cst_14 = arith.constant 0.176776692 : f32
    %30 = vector.broadcast %cst_14 : f32 to vector<8x8xf32>
    %31 = arith.mulf %29, %30 : vector<8x8xf32>
    %cst_15 = arith.constant dense<0xFF800000> : vector<8xf32>
    %32 = vector.multi_reduction <maximumf>, %31, %cst_15 [1] : vector<8x8xf32> to vector<8xf32>
    %33 = vector.shape_cast %32 : vector<8xf32> to vector<8x1xf32>
    %34 = vector.broadcast %33 : vector<8x1xf32> to vector<8x8xf32>
    %35 = arith.subf %31, %34 : vector<8x8xf32>
    %36 = math.exp %35 : vector<8x8xf32>
    %cst_16 = arith.constant dense<0.000000e+00> : vector<8xf32>
    %37 = vector.multi_reduction <add>, %36, %cst_16 [1] : vector<8x8xf32> to vector<8xf32>
    %38 = vector.shape_cast %37 : vector<8xf32> to vector<8x1xf32>
    %39 = tpu.reciprocal %38 {approx = true} : vector<8x1xf32> -> vector<8x1xf32>
    %40 = vector.broadcast %39 : vector<8x1xf32> to vector<8x8xf32>
    %41 = arith.mulf %36, %40 : vector<8x8xf32>
    %cst_17 = arith.constant dense<0.000000e+00> : vector<8x32xf32>
    %42 = tpu.matmul %41, %28, %cst_17 {dimension_numbers = #tpu.dot_dimension_numbers<[1], [0], [0], [1], [0, 0, 1, 1], [], []>} : vector<8x8xf32>, vector<8x32xf32>, vector<8x32xf32> -> vector<8x32xf32>
    %43 = vector.extract_strided_slice %24 {offsets = [0, 32], sizes = [8, 32], strides = [1, 1]} : vector<16x192xf32> to vector<8x32xf32>
    %44 = vector.extract_strided_slice %24 {offsets = [0, 96], sizes = [8, 32], strides = [1, 1]} : vector<16x192xf32> to vector<8x32xf32>
    %45 = vector.extract_strided_slice %24 {offsets = [0, 160], sizes = [8, 32], strides = [1, 1]} : vector<16x192xf32> to vector<8x32xf32>
    %cst_18 = arith.constant dense<0.000000e+00> : vector<8x8xf32>
    %46 = tpu.matmul %43, %44, %cst_18 {dimension_numbers = #tpu.dot_dimension_numbers<[1], [1], [0], [0], [0, 0, 1, 0], [], []>} : vector<8x32xf32>, vector<8x32xf32>, vector<8x8xf32> -> vector<8x8xf32>
    %cst_19 = arith.constant 0.176776692 : f32
    %47 = vector.broadcast %cst_19 : f32 to vector<8x8xf32>
    %48 = arith.mulf %46, %47 : vector<8x8xf32>
    %cst_20 = arith.constant dense<0xFF800000> : vector<8xf32>
    %49 = vector.multi_reduction <maximumf>, %48, %cst_20 [1] : vector<8x8xf32> to vector<8xf32>
    %50 = vector.shape_cast %49 : vector<8xf32> to vector<8x1xf32>
    %51 = vector.broadcast %50 : vector<8x1xf32> to vector<8x8xf32>
    %52 = arith.subf %48, %51 : vector<8x8xf32>
    %53 = math.exp %52 : vector<8x8xf32>
    %cst_21 = arith.constant dense<0.000000e+00> : vector<8xf32>
    %54 = vector.multi_reduction <add>, %53, %cst_21 [1] : vector<8x8xf32> to vector<8xf32>
    %55 = vector.shape_cast %54 : vector<8xf32> to vector<8x1xf32>
    %56 = tpu.reciprocal %55 {approx = true} : vector<8x1xf32> -> vector<8x1xf32>
    %57 = vector.broadcast %56 : vector<8x1xf32> to vector<8x8xf32>
    %58 = arith.mulf %53, %57 : vector<8x8xf32>
    %cst_22 = arith.constant dense<0.000000e+00> : vector<8x32xf32>
    %59 = tpu.matmul %58, %45, %cst_22 {dimension_numbers = #tpu.dot_dimension_numbers<[1], [0], [0], [1], [0, 0, 1, 1], [], []>} : vector<8x8xf32>, vector<8x32xf32>, vector<8x32xf32> -> vector<8x32xf32>
    %60 = tpu.concatenate %42, %59 in 1 : vector<8x32xf32>, vector<8x32xf32> -> vector<8x64xf32>
    %cst_23 = arith.constant dense<0.000000e+00> : vector<8x32xf32>
    %61 = tpu.matmul %60, %25, %cst_23 {dimension_numbers = #tpu.dot_dimension_numbers<[1], [0], [0], [1], [0, 0, 1, 1], [], []>} : vector<8x64xf32>, vector<64x32xf32>, vector<8x32xf32> -> vector<8x32xf32>
    %62 = vector.extract_strided_slice %24 {offsets = [8, 0], sizes = [8, 32], strides = [1, 1]} : vector<16x192xf32> to vector<8x32xf32>
    %63 = vector.extract_strided_slice %24 {offsets = [8, 64], sizes = [8, 32], strides = [1, 1]} : vector<16x192xf32> to vector<8x32xf32>
    %64 = vector.extract_strided_slice %24 {offsets = [8, 128], sizes = [8, 32], strides = [1, 1]} : vector<16x192xf32> to vector<8x32xf32>
    %cst_24 = arith.constant dense<0.000000e+00> : vector<8x8xf32>
    %65 = tpu.matmul %62, %63, %cst_24 {dimension_numbers = #tpu.dot_dimension_numbers<[1], [1], [0], [0], [0, 0, 1, 0], [], []>} : vector<8x32xf32>, vector<8x32xf32>, vector<8x8xf32> -> vector<8x8xf32>
    %cst_25 = arith.constant 0.176776692 : f32
    %66 = vector.broadcast %cst_25 : f32 to vector<8x8xf32>
    %67 = arith.mulf %65, %66 : vector<8x8xf32>
    %cst_26 = arith.constant dense<0xFF800000> : vector<8xf32>
    %68 = vector.multi_reduction <maximumf>, %67, %cst_26 [1] : vector<8x8xf32> to vector<8xf32>
    %69 = vector.shape_cast %68 : vector<8xf32> to vector<8x1xf32>
    %70 = vector.broadcast %69 : vector<8x1xf32> to vector<8x8xf32>
    %71 = arith.subf %67, %70 : vector<8x8xf32>
    %72 = math.exp %71 : vector<8x8xf32>
    %cst_27 = arith.constant dense<0.000000e+00> : vector<8xf32>
    %73 = vector.multi_reduction <add>, %72, %cst_27 [1] : vector<8x8xf32> to vector<8xf32>
    %74 = vector.shape_cast %73 : vector<8xf32> to vector<8x1xf32>
    %75 = tpu.reciprocal %74 {approx = true} : vector<8x1xf32> -> vector<8x1xf32>
    %76 = vector.broadcast %75 : vector<8x1xf32> to vector<8x8xf32>
    %77 = arith.mulf %72, %76 : vector<8x8xf32>
    %cst_28 = arith.constant dense<0.000000e+00> : vector<8x32xf32>
    %78 = tpu.matmul %77, %64, %cst_28 {dimension_numbers = #tpu.dot_dimension_numbers<[1], [0], [0], [1], [0, 0, 1, 1], [], []>} : vector<8x8xf32>, vector<8x32xf32>, vector<8x32xf32> -> vector<8x32xf32>
    %79 = vector.extract_strided_slice %24 {offsets = [8, 32], sizes = [8, 32], strides = [1, 1]} : vector<16x192xf32> to vector<8x32xf32>
    %80 = vector.extract_strided_slice %24 {offsets = [8, 96], sizes = [8, 32], strides = [1, 1]} : vector<16x192xf32> to vector<8x32xf32>
    %81 = vector.extract_strided_slice %24 {offsets = [8, 160], sizes = [8, 32], strides = [1, 1]} : vector<16x192xf32> to vector<8x32xf32>
    %cst_29 = arith.constant dense<0.000000e+00> : vector<8x8xf32>
    %82 = tpu.matmul %79, %80, %cst_29 {dimension_numbers = #tpu.dot_dimension_numbers<[1], [1], [0], [0], [0, 0, 1, 0], [], []>} : vector<8x32xf32>, vector<8x32xf32>, vector<8x8xf32> -> vector<8x8xf32>
    %cst_30 = arith.constant 0.176776692 : f32
    %83 = vector.broadcast %cst_30 : f32 to vector<8x8xf32>
    %84 = arith.mulf %82, %83 : vector<8x8xf32>
    %cst_31 = arith.constant dense<0xFF800000> : vector<8xf32>
    %85 = vector.multi_reduction <maximumf>, %84, %cst_31 [1] : vector<8x8xf32> to vector<8xf32>
    %86 = vector.shape_cast %85 : vector<8xf32> to vector<8x1xf32>
    %87 = vector.broadcast %86 : vector<8x1xf32> to vector<8x8xf32>
    %88 = arith.subf %84, %87 : vector<8x8xf32>
    %89 = math.exp %88 : vector<8x8xf32>
    %cst_32 = arith.constant dense<0.000000e+00> : vector<8xf32>
    %90 = vector.multi_reduction <add>, %89, %cst_32 [1] : vector<8x8xf32> to vector<8xf32>
    %91 = vector.shape_cast %90 : vector<8xf32> to vector<8x1xf32>
    %92 = tpu.reciprocal %91 {approx = true} : vector<8x1xf32> -> vector<8x1xf32>
    %93 = vector.broadcast %92 : vector<8x1xf32> to vector<8x8xf32>
    %94 = arith.mulf %89, %93 : vector<8x8xf32>
    %cst_33 = arith.constant dense<0.000000e+00> : vector<8x32xf32>
    %95 = tpu.matmul %94, %81, %cst_33 {dimension_numbers = #tpu.dot_dimension_numbers<[1], [0], [0], [1], [0, 0, 1, 1], [], []>} : vector<8x8xf32>, vector<8x32xf32>, vector<8x32xf32> -> vector<8x32xf32>
    %96 = tpu.concatenate %78, %95 in 1 : vector<8x32xf32>, vector<8x32xf32> -> vector<8x64xf32>
    %cst_34 = arith.constant dense<0.000000e+00> : vector<8x32xf32>
    %97 = tpu.matmul %96, %25, %cst_34 {dimension_numbers = #tpu.dot_dimension_numbers<[1], [0], [0], [1], [0, 0, 1, 1], [], []>} : vector<8x64xf32>, vector<64x32xf32>, vector<8x32xf32> -> vector<8x32xf32>
    %98 = tpu.concatenate %61, %97 in 0 : vector<8x32xf32>, vector<8x32xf32> -> vector<16x32xf32>
    %99 = arith.addf %1, %98 : vector<16x32xf32>
    %c0_35 = arith.constant 0 : index
    %c0_36 = arith.constant 0 : index
    %100 = vector.load %arg5[%c0_35, %c0_36] : memref<1x32xf32, #tpu.memory_space<vmem>>, vector<1x32xf32>
    %cst_37 = arith.constant dense<0.000000e+00> : vector<16xf32>
    %101 = vector.multi_reduction <add>, %99, %cst_37 [1] : vector<16x32xf32> to vector<16xf32>
    %102 = vector.shape_cast %101 : vector<16xf32> to vector<16x1xf32>
    %cst_38 = arith.constant 3.200000e+01 : f32
    %103 = vector.broadcast %cst_38 : f32 to vector<16x1xf32>
    %104 = arith.divf %102, %103 : vector<16x1xf32>
    %105 = vector.broadcast %104 : vector<16x1xf32> to vector<16x32xf32>
    %106 = arith.subf %99, %105 : vector<16x32xf32>
    %107 = arith.mulf %106, %106 : vector<16x32xf32>
    %cst_39 = arith.constant dense<0.000000e+00> : vector<16xf32>
    %108 = vector.multi_reduction <add>, %107, %cst_39 [1] : vector<16x32xf32> to vector<16xf32>
    %109 = vector.shape_cast %108 : vector<16xf32> to vector<16x1xf32>
    %cst_40 = arith.constant 3.200000e+01 : f32
    %110 = vector.broadcast %cst_40 : f32 to vector<16x1xf32>
    %111 = arith.divf %109, %110 : vector<16x1xf32>
    %112 = vector.broadcast %104 : vector<16x1xf32> to vector<16x32xf32>
    %113 = arith.subf %99, %112 : vector<16x32xf32>
    %cst_41 = arith.constant 9.99999974E-6 : f32
    %114 = vector.broadcast %cst_41 : f32 to vector<16x1xf32>
    %115 = arith.addf %111, %114 : vector<16x1xf32>
    %116 = math.rsqrt %115 : vector<16x1xf32>
    %117 = vector.broadcast %116 : vector<16x1xf32> to vector<16x32xf32>
    %118 = arith.mulf %113, %117 : vector<16x32xf32>
    %119 = vector.broadcast %100 : vector<1x32xf32> to vector<16x32xf32>
    %120 = arith.mulf %118, %119 : vector<16x32xf32>
    %c0_42 = arith.constant 0 : index
    %c0_43 = arith.constant 0 : index
    %121 = vector.load %arg6[%c0_42, %c0_43] : memref<32x128xf32, #tpu.memory_space<vmem>>, vector<32x128xf32>
    %cst_44 = arith.constant dense<0.000000e+00> : vector<16x128xf32>
    %122 = tpu.matmul %120, %121, %cst_44 {dimension_numbers = #tpu.dot_dimension_numbers<[1], [0], [0], [1], [0, 0, 1, 1], [], []>} : vector<16x32xf32>, vector<32x128xf32>, vector<16x128xf32> -> vector<16x128xf32>
    %cst_45 = arith.constant 5.000000e-01 : f32
    %123 = vector.broadcast %cst_45 : f32 to vector<16x128xf32>
    %124 = arith.mulf %123, %122 : vector<16x128xf32>
    %cst_46 = arith.constant 0.707106769 : f32
    %125 = vector.broadcast %cst_46 : f32 to vector<16x128xf32>
    %126 = arith.mulf %122, %125 : vector<16x128xf32>
    %127 = math.absf %126 : vector<16x128xf32>
    %cst_47 = arith.constant 0.327591091 : f32
    %128 = vector.broadcast %cst_47 : f32 to vector<16x128xf32>
    %129 = arith.mulf %128, %127 : vector<16x128xf32>
    %cst_48 = arith.constant 1.000000e+00 : f32
    %130 = vector.broadcast %cst_48 : f32 to vector<16x128xf32>
    %131 = arith.addf %130, %129 : vector<16x128xf32>
    %cst_49 = arith.constant 1.000000e+00 : f32
    %132 = vector.broadcast %cst_49 : f32 to vector<16x128xf32>
    %133 = arith.divf %132, %131 : vector<16x128xf32>
    %cst_50 = arith.constant 1.06140542 : f32
    %134 = vector.broadcast %cst_50 : f32 to vector<16x128xf32>
    %135 = arith.mulf %133, %134 : vector<16x128xf32>
    %cst_51 = arith.constant -1.45315206 : f32
    %136 = vector.broadcast %cst_51 : f32 to vector<16x128xf32>
    %137 = arith.addf %136, %135 : vector<16x128xf32>
    %138 = arith.mulf %133, %137 : vector<16x128xf32>
    %cst_52 = arith.constant 1.42141378 : f32
    %139 = vector.broadcast %cst_52 : f32 to vector<16x128xf32>
    %140 = arith.addf %139, %138 : vector<16x128xf32>
    %141 = arith.mulf %133, %140 : vector<16x128xf32>
    %cst_53 = arith.constant -0.284496725 : f32
    %142 = vector.broadcast %cst_53 : f32 to vector<16x128xf32>
    %143 = arith.addf %142, %141 : vector<16x128xf32>
    %144 = arith.mulf %133, %143 : vector<16x128xf32>
    %cst_54 = arith.constant 0.254829586 : f32
    %145 = vector.broadcast %cst_54 : f32 to vector<16x128xf32>
    %146 = arith.addf %145, %144 : vector<16x128xf32>
    %147 = arith.mulf %133, %146 : vector<16x128xf32>
    %cst_55 = arith.constant 0.000000e+00 : f32
    %148 = vector.broadcast %cst_55 : f32 to vector<16x128xf32>
    %149 = arith.subf %148, %126 : vector<16x128xf32>
    %150 = arith.mulf %149, %126 : vector<16x128xf32>
    %151 = math.exp %150 : vector<16x128xf32>
    %152 = arith.mulf %147, %151 : vector<16x128xf32>
    %cst_56 = arith.constant 1.000000e+00 : f32
    %153 = vector.broadcast %cst_56 : f32 to vector<16x128xf32>
    %154 = arith.subf %153, %152 : vector<16x128xf32>
    %cst_57 = arith.constant 0.000000e+00 : f32
    %155 = vector.broadcast %cst_57 : f32 to vector<16x128xf32>
    %156 = arith.cmpf oge, %126, %155 : vector<16x128xf32>
    %cst_58 = arith.constant 0.000000e+00 : f32
    %157 = vector.broadcast %cst_58 : f32 to vector<16x128xf32>
    %158 = arith.subf %157, %154 : vector<16x128xf32>
    %159 = arith.select %156, %154, %158 : vector<16x128xi1>, vector<16x128xf32>
    %cst_59 = arith.constant 1.000000e+00 : f32
    %160 = vector.broadcast %cst_59 : f32 to vector<16x128xf32>
    %161 = arith.addf %160, %159 : vector<16x128xf32>
    %162 = arith.mulf %124, %161 : vector<16x128xf32>
    %c0_60 = arith.constant 0 : index
    %c0_61 = arith.constant 0 : index
    %163 = vector.load %arg7[%c0_60, %c0_61] : memref<128x32xf32, #tpu.memory_space<vmem>>, vector<128x32xf32>
    %cst_62 = arith.constant dense<0.000000e+00> : vector<16x32xf32>
    %164 = tpu.matmul %162, %163, %cst_62 {dimension_numbers = #tpu.dot_dimension_numbers<[1], [0], [0], [1], [0, 0, 1, 1], [], []>} : vector<16x128xf32>, vector<128x32xf32>, vector<16x32xf32> -> vector<16x32xf32>
    %165 = arith.addf %99, %164 : vector<16x32xf32>
    %166 = vector.shape_cast %165 : vector<16x32xf32> to vector<2x8x32xf32>
    %c0_63 = arith.constant 0 : index
    %c0_64 = arith.constant 0 : index
    %c0_65 = arith.constant 0 : index
    %167 = vector.load %arg8[%c0_63, %c0_64, %c0_65] : memref<2x8x32xf32, #tpu.memory_space<vmem>>, vector<2x8x32xf32>
    tpu.vector_store %arg8[%c0_63, %c0_64, %c0_65], %166 {strides = array<i32>} : memref<2x8x32xf32, #tpu.memory_space<vmem>>, vector<2x8x32xf32>,
    return
  }
  func.func @transform_0(%arg0: i32) -> (i32, i32, i32) {
    %c0_i32 = arith.constant 0 : i32
    %c0_i32_0 = arith.constant 0 : i32
    %c0_i32_1 = arith.constant 0 : i32
    return %arg0, %c0_i32, %c0_i32_0 : i32, i32, i32
  }
  func.func @transform_1(%arg0: i32) -> (i32, i32) {
    %c0_i32 = arith.constant 0 : i32
    %c0_i32_0 = arith.constant 0 : i32
    %c0_i32_1 = arith.constant 0 : i32
    return %c0_i32, %c0_i32_0 : i32, i32
  }
  func.func @transform_2(%arg0: i32) -> (i32, i32) {
    %c0_i32 = arith.constant 0 : i32
    %c0_i32_0 = arith.constant 0 : i32
    %c0_i32_1 = arith.constant 0 : i32
    return %c0_i32, %c0_i32_0 : i32, i32
  }
  func.func @transform_3(%arg0: i32) -> (i32, i32) {
    %c0_i32 = arith.constant 0 : i32
    %c0_i32_0 = arith.constant 0 : i32
    %c0_i32_1 = arith.constant 0 : i32
    return %c0_i32, %c0_i32_0 : i32, i32
  }
  func.func @transform_4(%arg0: i32) -> (i32, i32) {
    %c0_i32 = arith.constant 0 : i32
    %c0_i32_0 = arith.constant 0 : i32
    %c0_i32_1 = arith.constant 0 : i32
    return %c0_i32, %c0_i32_0 : i32, i32
  }
  func.func @transform_5(%arg0: i32) -> (i32, i32) {
    %c0_i32 = arith.constant 0 : i32
    %c0_i32_0 = arith.constant 0 : i32
    %c0_i32_1 = arith.constant 0 : i32
    return %c0_i32, %c0_i32_0 : i32, i32
  }
  func.func @transform_6(%arg0: i32) -> (i32, i32) {
    %c0_i32 = arith.constant 0 : i32
    %c0_i32_0 = arith.constant 0 : i32
    %c0_i32_1 = arith.constant 0 : i32
    return %c0_i32, %c0_i32_0 : i32, i32
  }
  func.func @transform_7(%arg0: i32) -> (i32, i32, i32) {
    %c0_i32 = arith.constant 0 : i32
    %c0_i32_0 = arith.constant 0 : i32
    %c0_i32_1 = arith.constant 0 : i32
    return %arg0, %c0_i32, %c0_i32_0 : i32, i32, i32
  }
}

</mosaic_0001>

<llo_original>
// kernel: tpu_custom_call.1
$region0: #{tpu_custom_call.1}
  #allocation0 [shape = 'u32[]', space=smem, size = 0x4, offset = 0x4, fixed_abs, tag = 'smem constant byte address 0x4 - core index']
  #allocation1 [shape = 'u32[72,128]{1,0:T(1,128)}', space=vmem, size = 0x9000, scoped, tag = 'internal scratch']
  %s0 = inlined_call_operand.vmem [shape: f32[2,8,32], index: 0, kind: input, shape index: {}]
  %s1 = inlined_call_operand.vmem [shape: f32[1,32], index: 1, kind: input, shape index: {}]
  %s2 = inlined_call_operand.vmem [shape: f32[32,192], index: 2, kind: input, shape index: {}]
  %s3 = inlined_call_operand.vmem [shape: f32[64,32], index: 3, kind: input, shape index: {}]
  %s4 = inlined_call_operand.vmem [shape: f32[1,32], index: 4, kind: input, shape index: {}]
  %s5 = inlined_call_operand.vmem [shape: f32[32,128], index: 5, kind: input, shape index: {}]
  %s6 = inlined_call_operand.vmem [shape: f32[128,32], index: 6, kind: input, shape index: {}]
  %s7 = inlined_call_operand.hbm [shape: f32[2,8,32], index: 7, kind: output, shape index: {}]
  %s8 = sld [smem:[#allocation0]]
  $region38: #{tpu_custom_call.1} parent=0
    _
  %s10 = ssub.s32 1, %s8
  %s11 = scalar_select 0, %s10, %s8
  $region1: #{tpu_custom_call.1} parent=0
    #allocation2 [shape = 'u8[8192]{0}', space=vmem, size = 0x2000, scoped, tag = 'output window, operand 0, single buffered']
    #allocation3 [shape = 's32[1]{0}', space=sflag, size = 0x4, scoped, tag = 'scoped memory for tpu_custom_call.1']
    %12 = vsyncpa [#allocation3], 0
    // Predicated region
    $region2: #{tpu_custom_call.1} parent=1 // pred_check
      _
    $region3: #{tpu_custom_call.1} parent=1 // pred_check_branch
      %14 = sbr.rel (0) target = $region5
    $region4: #{tpu_custom_call.1} parent=1 // pred_region
      _
    $region5: #{tpu_custom_call.1} parent=1 // pred_fallthru
      _
    // Predicated region
    $region6: #{tpu_custom_call.1} parent=1 // pred_check
      _
    $region7: #{tpu_custom_call.1} parent=1 // pred_check_branch
      %16 = sbr.rel (0) target = $region9
    $region8: #{tpu_custom_call.1} parent=1 // pred_region
      _
    $region9: #{tpu_custom_call.1} parent=1 // pred_fallthru
      _
    // Predicated region
    $region10: #{tpu_custom_call.1} parent=1 // pred_check
      _
    $region11: #{tpu_custom_call.1} parent=1 // pred_check_branch
      %18 = sbr.rel (0) target = $region13
    $region12: #{tpu_custom_call.1} parent=1 // pred_region
      _
    $region13: #{tpu_custom_call.1} parent=1 // pred_fallthru
      _
    // Predicated region
    $region14: #{tpu_custom_call.1} parent=1 // pred_check
      _
    $region15: #{tpu_custom_call.1} parent=1 // pred_check_branch
      %20 = sbr.rel (0) target = $region17
    $region16: #{tpu_custom_call.1} parent=1 // pred_region
      _
    $region17: #{tpu_custom_call.1} parent=1 // pred_fallthru
      _
    // Predicated region
    $region18: #{tpu_custom_call.1} parent=1 // pred_check
      _
    $region19: #{tpu_custom_call.1} parent=1 // pred_check_branch
      %22 = sbr.rel (0) target = $region21
    $region20: #{tpu_custom_call.1} parent=1 // pred_region
      _
    $region21: #{tpu_custom_call.1} parent=1 // pred_fallthru
      _
    // Predicated region
    $region22: #{tpu_custom_call.1} parent=1 // pred_check
      _
    $region23: #{tpu_custom_call.1} parent=1 // pred_check_branch
      %24 = sbr.rel (0) target = $region25
    $region24: #{tpu_custom_call.1} parent=1 // pred_region
      _
    $region25: #{tpu_custom_call.1} parent=1 // pred_fallthru
      _
    // Predicated region
    $region26: #{tpu_custom_call.1} parent=1 // pred_check
      _
    $region27: #{tpu_custom_call.1} parent=1 // pred_check_branch
      %26 = sbr.rel (0) target = $region29
    $region28: #{tpu_custom_call.1} parent=1 // pred_region
      _
    $region29: #{tpu_custom_call.1} parent=1 // pred_fallthru
      _
    %v27 = vld [vmem:[%s0] sm:$0xff]
    %v28 = vld [vmem:[%s0 + $0x8] sm:$0xff]
    %v29 = vld [vmem:[%s1] sm:$0x1]
    %vm30 = vcmask 261120
    %v31 = vsel %vm30, %v27, 0.0
    %32 = vadd.xlane.f32.xlu0 %v31
    %v33 = vpop.xlane.xlu0 %32
    %v34 = vsel %vm30, %v28, 0.0
    %35 = vadd.xlane.f32.xlu0 %v34
    %v36 = vpop.xlane.xlu0 %35
    %v37 = vrcp.pop 32.0
    %v38 = vmul.f32 32.0, %v37
    %v39 = vsub.f32 1.0, %v38
    %v40 = vmul.f32 %v37, %v39
    %v41 = vadd.f32 %v37, %v40
    %vm42 = vweird.f32 %v37
    %v43 = vsel %vm42, %v37, %v41
    %v44 = vmul.f32 %v33, %v43
    %v45 = vmul.f32 %v36, %v43
    %v46 = vsub.f32 %v27, %v44
    %v47 = vsub.f32 %v28, %v45
    %v48 = vmul.f32 %v46, %v46
    %v49 = vmul.f32 %v47, %v47
    %v50 = vsel %vm30, %v48, 0.0
    %51 = vadd.xlane.f32.xlu0 %v50
    %v52 = vpop.xlane.xlu0 %51
    %v53 = vsel %vm30, %v49, 0.0
    %54 = vadd.xlane.f32.xlu0 %v53
    %v55 = vpop.xlane.xlu0 %54
    %v56 = vmul.f32 %v52, %v43
    %v57 = vmul.f32 %v55, %v43
    %v58 = vadd.f32 %v56, 1e-05
    %v59 = vadd.f32 %v57, 1e-05
    %v60 = vrsqrt.pop %v58
    %v61 = vmul.f32 %v60, %v58
    %v62 = vmul.f32 %v61, %v60
    %v63 = vmul.f32 0.5, %v62
    %v64 = vsub.f32 1.5, %v63
    %v65 = vmul.f32 %v60, %v64
    %vm66 = vweird.f32 %v58
    %vm67 = vweird.f32 %v60
    %vm68 = vmor %vm66, %vm67
    %v69 = vsel %vm68, %v60, %v65
    %v70 = vrsqrt.pop %v59
    %v71 = vmul.f32 %v70, %v59
    %v72 = vmul.f32 %v71, %v70
    %v73 = vmul.f32 0.5, %v72
    %v74 = vsub.f32 1.5, %v73
    %v75 = vmul.f32 %v70, %v74
    %vm76 = vweird.f32 %v59
    %vm77 = vweird.f32 %v70
    %vm78 = vmor %vm76, %vm77
    %v79 = vsel %vm78, %v70, %v75
    %v80 = vmul.f32 %v46, %v69
    %v81 = vmul.f32 %v47, %v79
    %v83 = vperm.slane %v29, 0
    %v85 = vmul.f32 %v80, %v83
    %v86 = vmul.f32 %v81, %v83
    %v87 = vld [vmem:[%s2] sm:$0xff]
    %v88 = vld [vmem:[%s2 + $0x8] sm:$0xff]
    %v89 = vld [vmem:[%s2 + $0x10] sm:$0xff]
    %v90 = vld [vmem:[%s2 + $0x18] sm:$0xff]
    %v91 = vld [vmem:[%s2 + $0x20] sm:$0xff]
    %v92 = vld [vmem:[%s2 + $0x28] sm:$0xff]
    %v93 = vld [vmem:[%s2 + $0x30] sm:$0xff]
    %v94 = vld [vmem:[%s2 + $0x38] sm:$0xff]
    %v96 = vsel %vm30, %v85, 0
    %v99 = vsel %vm30, %v86, 0
    %101 = vmatpush.msra.mxu0 0.0
    %102 = vmatpush.msra.mxu0 0.0
    %103 = vmatpush.msra.mxu0 0.0
    %104 = vmatpush.msra.mxu0 0.0
    %105 = vmatpush.msra.mxu0 0.0
    %106 = vmatpush.msra.mxu0 0.0
    %107 = vmatpush.msra.mxu0 0.0
    %108 = vmatpush.msra.mxu0 0.0
    %109 = vmatpush.msra.mxu0 0.0
    %110 = vmatpush.msra.mxu0 0.0
    %111 = vmatpush.msra.mxu0 0.0
    %112 = vmatpush.msra.mxu0 0.0
    %113 = vmatpush.msra.mxu0 %v93
    %114 = vmatpush.msra.mxu0 %v91
    %115 = vmatpush.msra.mxu0 %v89
    %116 = vmatpush.msra.mxu0 %v87
    %117 = vmatmul.f32.gmra.mxu0 %v96
    %v118 = vpop.f32.mrf.mxu0
    %v119 = vadd.f32 0.0, %v118
    %120 = vmatmul.f32.gmra.mxu0 %v99
    %v121 = vpop.f32.mrf.mxu0
    %v122 = vadd.f32 0.0, %v121
    %123 = vdwg.mxu0
    %124 = vmatpush.msra.mxu0 0.0
    %125 = vmatpush.msra.mxu0 0.0
    %126 = vmatpush.msra.mxu0 0.0
    %127 = vmatpush.msra.mxu0 0.0
    %128 = vmatpush.msra.mxu0 0.0
    %129 = vmatpush.msra.mxu0 0.0
    %130 = vmatpush.msra.mxu0 0.0
    %131 = vmatpush.msra.mxu0 0.0
    %132 = vmatpush.msra.mxu0 0.0
    %133 = vmatpush.msra.mxu0 0.0
    %134 = vmatpush.msra.mxu0 0.0
    %135 = vmatpush.msra.mxu0 0.0
    %136 = vmatpush.msra.mxu0 %v94
    %137 = vmatpush.msra.mxu0 %v92
    %138 = vmatpush.msra.mxu0 %v90
    %139 = vmatpush.msra.mxu0 %v88
    %140 = vmatmul.f32.gmra.mxu0 %v96
    %v141 = vpop.f32.mrf.mxu0
    %v142 = vadd.f32 0.0, %v141
    %143 = vmatmul.f32.gmra.mxu0 %v99
    %v144 = vpop.f32.mrf.mxu0
    %v145 = vadd.f32 0.0, %v144
    %146 = vdwg.mxu0
    %v147 = vld [vmem:[%s3] sm:$0xff]
    %v148 = vld [vmem:[%s3 + $0x8] sm:$0xff]
    %v149 = vld [vmem:[%s3 + $0x10] sm:$0xff]
    %v150 = vld [vmem:[%s3 + $0x18] sm:$0xff]
    %v151 = vld [vmem:[%s3 + $0x20] sm:$0xff]
    %v152 = vld [vmem:[%s3 + $0x28] sm:$0xff]
    %v153 = vld [vmem:[%s3 + $0x30] sm:$0xff]
    %v154 = vld [vmem:[%s3 + $0x38] sm:$0xff]
    %156 = vrot.lane.b32.xlu0 %v119, 64
    %v157 = vpop.permute.xlu0 %156
    %v158 = vsel %vm30, %v119, 0
    %v160 = vsel %vm30, %v157, 0
    %162 = vmatpush.xpose.msra.mxu0 0.0
    %163 = vmatpush.xpose.msra.mxu0 0.0
    %164 = vmatpush.xpose.msra.mxu0 0.0
    %165 = vmatpush.xpose.msra.mxu0 0.0
    %166 = vmatpush.xpose.msra.mxu0 0.0
    %167 = vmatpush.xpose.msra.mxu0 0.0
    %168 = vmatpush.xpose.msra.mxu0 0.0
    %169 = vmatpush.xpose.msra.mxu0 0.0
    %170 = vmatpush.xpose.msra.mxu0 0.0
    %171 = vmatpush.xpose.msra.mxu0 0.0
    %172 = vmatpush.xpose.msra.mxu0 0.0
    %173 = vmatpush.xpose.msra.mxu0 0.0
    %174 = vmatpush.xpose.msra.mxu0 0.0
    %175 = vmatpush.xpose.msra.mxu0 0.0
    %176 = vmatpush.xpose.msra.mxu0 0.0
    %177 = vmatpush.xpose.msra.mxu0 %v160
    %178 = vmatmul.f32.gmra.mxu0 %v158
    %v179 = vpop.f32.mrf.mxu0
    %v180 = vadd.f32 0.0, %v179
    %181 = vdwg.mxu0
    %v182 = vmul.f32 %v180, 0.17677669
    %vm183 = vcmask 64512
    %v184 = vsel %vm183, %v182, -inf
    %185 = vmax.xlane.f32.xlu0 %v184
    %v186 = vpop.xlane.xlu0 %185
    %v187 = vsub.f32 %v182, %v186
    %v188 = vmul.f32 %v187, 1.442695
    %v189 = vpow.pop %v188
    %v190 = vsel %vm183, %v189, 0.0
    %191 = vadd.xlane.f32.xlu0 %v190
    %v192 = vpop.xlane.xlu0 %191
    %v193 = vrcp.pop %v192
    %v194 = vmul.f32 %v189, %v193
    %v196 = vsel %vm183, %v194, 0
    %198 = vmatpush.msra.mxu0 0.0
    %199 = vmatpush.msra.mxu0 0.0
    %200 = vmatpush.msra.mxu0 0.0
    %201 = vmatpush.msra.mxu0 0.0
    %202 = vmatpush.msra.mxu0 0.0
    %203 = vmatpush.msra.mxu0 0.0
    %204 = vmatpush.msra.mxu0 0.0
    %205 = vmatpush.msra.mxu0 0.0
    %206 = vmatpush.msra.mxu0 0.0
    %207 = vmatpush.msra.mxu0 0.0
    %208 = vmatpush.msra.mxu0 0.0
    %209 = vmatpush.msra.mxu0 0.0
    %210 = vmatpush.msra.mxu0 0.0
    %211 = vmatpush.msra.mxu0 0.0
    %212 = vmatpush.msra.mxu0 0.0
    %213 = vmatpush.msra.mxu0 %v142
    %214 = vmatmul.f32.gmra.mxu0 %v196
    %v215 = vpop.f32.mrf.mxu0
    %v216 = vadd.f32 0.0, %v215
    %217 = vdwg.mxu0
    %218 = vrot.lane.b32.xlu0 %v119, 96
    %v219 = vpop.permute.xlu0 %218
    %220 = vrot.lane.b32.xlu0 %v119, 32
    %v221 = vpop.permute.xlu0 %220
    %v222 = vsel %vm30, %v219, 0
    %v224 = vsel %vm30, %v221, 0
    %226 = vmatpush.xpose.msra.mxu0 0.0
    %227 = vmatpush.xpose.msra.mxu0 0.0
    %228 = vmatpush.xpose.msra.mxu0 0.0
    %229 = vmatpush.xpose.msra.mxu0 0.0
    %230 = vmatpush.xpose.msra.mxu0 0.0
    %231 = vmatpush.xpose.msra.mxu0 0.0
    %232 = vmatpush.xpose.msra.mxu0 0.0
    %233 = vmatpush.xpose.msra.mxu0 0.0
    %234 = vmatpush.xpose.msra.mxu0 0.0
    %235 = vmatpush.xpose.msra.mxu0 0.0
    %236 = vmatpush.xpose.msra.mxu0 0.0
    %237 = vmatpush.xpose.msra.mxu0 0.0
    %238 = vmatpush.xpose.msra.mxu0 0.0
    %239 = vmatpush.xpose.msra.mxu0 0.0
    %240 = vmatpush.xpose.msra.mxu0 0.0
    %241 = vmatpush.xpose.msra.mxu0 %v224
    %242 = vmatmul.f32.gmra.mxu0 %v222
    %v243 = vpop.f32.mrf.mxu0
    %v244 = vadd.f32 0.0, %v243
    %245 = vdwg.mxu0
    %v246 = vmul.f32 %v244, 0.17677669
    %v247 = vsel %vm183, %v246, -inf
    %248 = vmax.xlane.f32.xlu0 %v247
    %v249 = vpop.xlane.xlu0 %248
    %v250 = vsub.f32 %v246, %v249
    %v251 = vmul.f32 %v250, 1.442695
    %v252 = vpow.pop %v251
    %v253 = vsel %vm183, %v252, 0.0
    %254 = vadd.xlane.f32.xlu0 %v253
    %v255 = vpop.xlane.xlu0 %254
    %v256 = vrcp.pop %v255
    %v257 = vmul.f32 %v252, %v256
    %259 = vrot.lane.b32.xlu0 %v142, 96
    %v260 = vpop.permute.xlu0 %259
    %v263 = vsel %vm183, %v257, 0
    %265 = vmatpush.msra.mxu0 0.0
    %266 = vmatpush.msra.mxu0 0.0
    %267 = vmatpush.msra.mxu0 0.0
    %268 = vmatpush.msra.mxu0 0.0
    %269 = vmatpush.msra.mxu0 0.0
    %270 = vmatpush.msra.mxu0 0.0
    %271 = vmatpush.msra.mxu0 0.0
    %272 = vmatpush.msra.mxu0 0.0
    %273 = vmatpush.msra.mxu0 0.0
    %274 = vmatpush.msra.mxu0 0.0
    %275 = vmatpush.msra.mxu0 0.0
    %276 = vmatpush.msra.mxu0 0.0
    %277 = vmatpush.msra.mxu0 0.0
    %278 = vmatpush.msra.mxu0 0.0
    %279 = vmatpush.msra.mxu0 0.0
    %280 = vmatpush.msra.mxu0 %v260
    %281 = vmatmul.f32.gmra.mxu0 %v263
    %v282 = vpop.f32.mrf.mxu0
    %v283 = vadd.f32 0.0, %v282
    %284 = vdwg.mxu0
    %286 = vrot.lane.b32.xlu0 %v283, 32
    %v287 = vpop.permute.xlu0 %286
    %v289 = vsel %vm30, %v216, %v287
    %vm290 = vcmask 523264
    %v292 = vsel %vm290, %v289, 0
    %294 = vmatpush.msra.mxu0 0.0
    %295 = vmatpush.msra.mxu0 0.0
    %296 = vmatpush.msra.mxu0 0.0
    %297 = vmatpush.msra.mxu0 0.0
    %298 = vmatpush.msra.mxu0 0.0
    %299 = vmatpush.msra.mxu0 0.0
    %300 = vmatpush.msra.mxu0 0.0
    %301 = vmatpush.msra.mxu0 0.0
    %302 = vmatpush.msra.mxu0 %v154
    %303 = vmatpush.msra.mxu0 %v153
    %304 = vmatpush.msra.mxu0 %v152
    %305 = vmatpush.msra.mxu0 %v151
    %306 = vmatpush.msra.mxu0 %v150
    %307 = vmatpush.msra.mxu0 %v149
    %308 = vmatpush.msra.mxu0 %v148
    %309 = vmatpush.msra.mxu0 %v147
    %310 = vmatmul.f32.gmra.mxu0 %v292
    %v311 = vpop.f32.mrf.mxu0
    %v312 = vadd.f32 0.0, %v311
    %313 = vdwg.mxu0
    %315 = vrot.lane.b32.xlu0 %v122, 64
    %v316 = vpop.permute.xlu0 %315
    %v317 = vsel %vm30, %v122, 0
    %v319 = vsel %vm30, %v316, 0
    %321 = vmatpush.xpose.msra.mxu0 0.0
    %322 = vmatpush.xpose.msra.mxu0 0.0
    %323 = vmatpush.xpose.msra.mxu0 0.0
    %324 = vmatpush.xpose.msra.mxu0 0.0
    %325 = vmatpush.xpose.msra.mxu0 0.0
    %326 = vmatpush.xpose.msra.mxu0 0.0
    %327 = vmatpush.xpose.msra.mxu0 0.0
    %328 = vmatpush.xpose.msra.mxu0 0.0
    %329 = vmatpush.xpose.msra.mxu0 0.0
    %330 = vmatpush.xpose.msra.mxu0 0.0
    %331 = vmatpush.xpose.msra.mxu0 0.0
    %332 = vmatpush.xpose.msra.mxu0 0.0
    %333 = vmatpush.xpose.msra.mxu0 0.0
    %334 = vmatpush.xpose.msra.mxu0 0.0
    %335 = vmatpush.xpose.msra.mxu0 0.0
    %336 = vmatpush.xpose.msra.mxu0 %v319
    %337 = vmatmul.f32.gmra.mxu0 %v317
    %v338 = vpop.f32.mrf.mxu0
    %v339 = vadd.f32 0.0, %v338
    %340 = vdwg.mxu0
    %v341 = vmul.f32 %v339, 0.17677669
    %v342 = vsel %vm183, %v341, -inf
    %343 = vmax.xlane.f32.xlu0 %v342
    %v344 = vpop.xlane.xlu0 %343
    %v345 = vsub.f32 %v341, %v344
    %v346 = vmul.f32 %v345, 1.442695
    %v347 = vpow.pop %v346
    %v348 = vsel %vm183, %v347, 0.0
    %349 = vadd.xlane.f32.xlu0 %v348
    %v350 = vpop.xlane.xlu0 %349
    %v351 = vrcp.pop %v350
    %v352 = vmul.f32 %v347, %v351
    %v354 = vsel %vm183, %v352, 0
    %356 = vmatpush.msra.mxu0 0.0
    %357 = vmatpush.msra.mxu0 0.0
    %358 = vmatpush.msra.mxu0 0.0
    %359 = vmatpush.msra.mxu0 0.0
    %360 = vmatpush.msra.mxu0 0.0
    %361 = vmatpush.msra.mxu0 0.0
    %362 = vmatpush.msra.mxu0 0.0
    %363 = vmatpush.msra.mxu0 0.0
    %364 = vmatpush.msra.mxu0 0.0
    %365 = vmatpush.msra.mxu0 0.0
    %366 = vmatpush.msra.mxu0 0.0
    %367 = vmatpush.msra.mxu0 0.0
    %368 = vmatpush.msra.mxu0 0.0
    %369 = vmatpush.msra.mxu0 0.0
    %370 = vmatpush.msra.mxu0 0.0
    %371 = vmatpush.msra.mxu0 %v145
    %372 = vmatmul.f32.gmra.mxu0 %v354
    %v373 = vpop.f32.mrf.mxu0
    %v374 = vadd.f32 0.0, %v373
    %375 = vdwg.mxu0
    %376 = vrot.lane.b32.xlu0 %v122, 96
    %v377 = vpop.permute.xlu0 %376
    %378 = vrot.lane.b32.xlu0 %v122, 32
    %v379 = vpop.permute.xlu0 %378
    %v380 = vsel %vm30, %v377, 0
    %v382 = vsel %vm30, %v379, 0
    %384 = vmatpush.xpose.msra.mxu0 0.0
    %385 = vmatpush.xpose.msra.mxu0 0.0
    %386 = vmatpush.xpose.msra.mxu0 0.0
    %387 = vmatpush.xpose.msra.mxu0 0.0
    %388 = vmatpush.xpose.msra.mxu0 0.0
    %389 = vmatpush.xpose.msra.mxu0 0.0
    %390 = vmatpush.xpose.msra.mxu0 0.0
    %391 = vmatpush.xpose.msra.mxu0 0.0
    %392 = vmatpush.xpose.msra.mxu0 0.0
    %393 = vmatpush.xpose.msra.mxu0 0.0
    %394 = vmatpush.xpose.msra.mxu0 0.0
    %395 = vmatpush.xpose.msra.mxu0 0.0
    %396 = vmatpush.xpose.msra.mxu0 0.0
    %397 = vmatpush.xpose.msra.mxu0 0.0
    %398 = vmatpush.xpose.msra.mxu0 0.0
    %399 = vmatpush.xpose.msra.mxu0 %v382
    %400 = vmatmul.f32.gmra.mxu0 %v380
    %v401 = vpop.f32.mrf.mxu0
    %v402 = vadd.f32 0.0, %v401
    %403 = vdwg.mxu0
    %v404 = vmul.f32 %v402, 0.17677669
    %v405 = vsel %vm183, %v404, -inf
    %406 = vmax.xlane.f32.xlu0 %v405
    %v407 = vpop.xlane.xlu0 %406
    %v408 = vsub.f32 %v404, %v407
    %v409 = vmul.f32 %v408, 1.442695
    %v410 = vpow.pop %v409
    %v411 = vsel %vm183, %v410, 0.0
    %412 = vadd.xlane.f32.xlu0 %v411
    %v413 = vpop.xlane.xlu0 %412
    %v414 = vrcp.pop %v413
    %v415 = vmul.f32 %v410, %v414
    %417 = vrot.lane.b32.xlu0 %v145, 96
    %v418 = vpop.permute.xlu0 %417
    %v421 = vsel %vm183, %v415, 0
    %423 = vmatpush.msra.mxu0 0.0
    %424 = vmatpush.msra.mxu0 0.0
    %425 = vmatpush.msra.mxu0 0.0
    %426 = vmatpush.msra.mxu0 0.0
    %427 = vmatpush.msra.mxu0 0.0
    %428 = vmatpush.msra.mxu0 0.0
    %429 = vmatpush.msra.mxu0 0.0
    %430 = vmatpush.msra.mxu0 0.0
    %431 = vmatpush.msra.mxu0 0.0
    %432 = vmatpush.msra.mxu0 0.0
    %433 = vmatpush.msra.mxu0 0.0
    %434 = vmatpush.msra.mxu0 0.0
    %435 = vmatpush.msra.mxu0 0.0
    %436 = vmatpush.msra.mxu0 0.0
    %437 = vmatpush.msra.mxu0 0.0
    %438 = vmatpush.msra.mxu0 %v418
    %439 = vmatmul.f32.gmra.mxu0 %v421
    %v440 = vpop.f32.mrf.mxu0
    %v441 = vadd.f32 0.0, %v440
    %442 = vdwg.mxu0
    %444 = vrot.lane.b32.xlu0 %v441, 32
    %v445 = vpop.permute.xlu0 %444
    %v447 = vsel %vm30, %v374, %v445
    %v449 = vsel %vm290, %v447, 0
    %451 = vmatpush.msra.mxu0 0.0
    %452 = vmatpush.msra.mxu0 0.0
    %453 = vmatpush.msra.mxu0 0.0
    %454 = vmatpush.msra.mxu0 0.0
    %455 = vmatpush.msra.mxu0 0.0
    %456 = vmatpush.msra.mxu0 0.0
    %457 = vmatpush.msra.mxu0 0.0
    %458 = vmatpush.msra.mxu0 0.0
    %459 = vmatpush.msra.mxu0 %v154
    %460 = vmatpush.msra.mxu0 %v153
    %461 = vmatpush.msra.mxu0 %v152
    %462 = vmatpush.msra.mxu0 %v151
    %463 = vmatpush.msra.mxu0 %v150
    %464 = vmatpush.msra.mxu0 %v149
    %465 = vmatpush.msra.mxu0 %v148
    %466 = vmatpush.msra.mxu0 %v147
    %467 = vmatmul.f32.gmra.mxu0 %v449
    %v468 = vpop.f32.mrf.mxu0
    %v469 = vadd.f32 0.0, %v468
    %470 = vdwg.mxu0
    %v471 = vadd.f32 %v27, %v312
    %v472 = vadd.f32 %v28, %v469
    %v473 = vld [vmem:[%s4] sm:$0x1]
    %v474 = vsel %vm30, %v471, 0.0
    %475 = vadd.xlane.f32.xlu0 %v474
    %v476 = vpop.xlane.xlu0 %475
    %v477 = vsel %vm30, %v472, 0.0
    %478 = vadd.xlane.f32.xlu0 %v477
    %v479 = vpop.xlane.xlu0 %478
    %v480 = vmul.f32 %v476, %v43
    %v481 = vmul.f32 %v479, %v43
    %v482 = vsub.f32 %v471, %v480
    %v483 = vsub.f32 %v472, %v481
    %v484 = vmul.f32 %v482, %v482
    %v485 = vmul.f32 %v483, %v483
    %v486 = vsel %vm30, %v484, 0.0
    %487 = vadd.xlane.f32.xlu0 %v486
    %v488 = vpop.xlane.xlu0 %487
    %v489 = vsel %vm30, %v485, 0.0
    %490 = vadd.xlane.f32.xlu0 %v489
    %v491 = vpop.xlane.xlu0 %490
    %v492 = vmul.f32 %v488, %v43
    %v493 = vmul.f32 %v491, %v43
    %v494 = vadd.f32 %v492, 1e-05
    %v495 = vadd.f32 %v493, 1e-05
    %v496 = vrsqrt.pop %v494
    %v497 = vmul.f32 %v496, %v494
    %v498 = vmul.f32 %v497, %v496
    %v499 = vmul.f32 0.5, %v498
    %v500 = vsub.f32 1.5, %v499
    %v501 = vmul.f32 %v496, %v500
    %vm502 = vweird.f32 %v494
    %vm503 = vweird.f32 %v496
    %vm504 = vmor %vm502, %vm503
    %v505 = vsel %vm504, %v496, %v501
    %v506 = vrsqrt.pop %v495
    %v507 = vmul.f32 %v506, %v495
    %v508 = vmul.f32 %v507, %v506
    %v509 = vmul.f32 0.5, %v508
    %v510 = vsub.f32 1.5, %v509
    %v511 = vmul.f32 %v506, %v510
    %vm512 = vweird.f32 %v495
    %vm513 = vweird.f32 %v506
    %vm514 = vmor %vm512, %vm513
    %v515 = vsel %vm514, %v506, %v511
    %v516 = vmul.f32 %v482, %v505
    %v517 = vmul.f32 %v483, %v515
    %v519 = vperm.slane %v473, 0
    %v521 = vmul.f32 %v516, %v519
    %v522 = vmul.f32 %v517, %v519
    %v523 = vld [vmem:[%s5] sm:$0xff]
    %v524 = vld [vmem:[%s5 + $0x8] sm:$0xff]
    %v525 = vld [vmem:[%s5 + $0x10] sm:$0xff]
    %v526 = vld [vmem:[%s5 + $0x18] sm:$0xff]
    %v528 = vsel %vm30, %v521, 0
    %v531 = vsel %vm30, %v522, 0
    %533 = vmatpush.msra.mxu0 0.0
    %534 = vmatpush.msra.mxu0 0.0
    %535 = vmatpush.msra.mxu0 0.0
    %536 = vmatpush.msra.mxu0 0.0
    %537 = vmatpush.msra.mxu0 0.0
    %538 = vmatpush.msra.mxu0 0.0
    %539 = vmatpush.msra.mxu0 0.0
    %540 = vmatpush.msra.mxu0 0.0
    %541 = vmatpush.msra.mxu0 0.0
    %542 = vmatpush.msra.mxu0 0.0
    %543 = vmatpush.msra.mxu0 0.0
    %544 = vmatpush.msra.mxu0 0.0
    %545 = vmatpush.msra.mxu0 %v526
    %546 = vmatpush.msra.mxu0 %v525
    %547 = vmatpush.msra.mxu0 %v524
    %548 = vmatpush.msra.mxu0 %v523
    %549 = vmatmul.f32.gmra.mxu0 %v528
    %v550 = vpop.f32.mrf.mxu0
    %v551 = vadd.f32 0.0, %v550
    %552 = vmatmul.f32.gmra.mxu0 %v531
    %v553 = vpop.f32.mrf.mxu0
    %v554 = vadd.f32 0.0, %v553
    %555 = vdwg.mxu0
    %v556 = vmul.f32 %v551, 0.5
    %v557 = vmul.f32 %v554, 0.5
    %v558 = vmul.f32 %v551, 0.70710677
    %v559 = vmul.f32 %v554, 0.70710677
    %v560 = vand.u32 2147483647, %v558
    %v561 = vand.u32 2147483647, %v559
    %v562 = vmul.f32 %v560, 0.3275911
    %v563 = vmul.f32 %v561, 0.3275911
    %v564 = vadd.f32 %v562, 1.0
    %v565 = vadd.f32 %v563, 1.0
    %v566 = vrcp.pop %v564
    %v567 = vmul.f32 %v564, %v566
    %v568 = vsub.f32 1.0, %v567
    %v569 = vmul.f32 %v566, %v568
    %v570 = vadd.f32 %v566, %v569
    %vm571 = vweird.f32 %v564
    %vm572 = vweird.f32 %v566
    %vm573 = vmor %vm571, %vm572
    %v574 = vsel %vm573, %v566, %v570
    %v575 = vand.u32 2147483647, %v564
    %vm576 = vcmp.eq.f32.partialorder %v575, 8.507059e+37
    %v577 = vand.u32 %v564, 2147483648
    %v578 = vor.u32 1.1754944e-38, %v577
    %v579 = vsel %vm576, %v578, %v574
    %v580 = vmul.f32 1.0, %v579
    %v581 = vrcp.pop %v565
    %v582 = vmul.f32 %v565, %v581
    %v583 = vsub.f32 1.0, %v582
    %v584 = vmul.f32 %v581, %v583
    %v585 = vadd.f32 %v581, %v584
    %vm586 = vweird.f32 %v565
    %vm587 = vweird.f32 %v581
    %vm588 = vmor %vm586, %vm587
    %v589 = vsel %vm588, %v581, %v585
    %v590 = vand.u32 2147483647, %v565
    %vm591 = vcmp.eq.f32.partialorder %v590, 8.507059e+37
    %v592 = vand.u32 %v565, 2147483648
    %v593 = vor.u32 1.1754944e-38, %v592
    %v594 = vsel %vm591, %v593, %v589
    %v595 = vmul.f32 1.0, %v594
    %v596 = vmul.f32 %v580, 1.0614054
    %v597 = vmul.f32 %v595, 1.0614054
    %v598 = vadd.f32 %v596, -1.4531521
    %v599 = vadd.f32 %v597, -1.4531521
    %v600 = vmul.f32 %v580, %v598
    %v601 = vmul.f32 %v595, %v599
    %v602 = vadd.f32 %v600, 1.4214138
    %v603 = vadd.f32 %v601, 1.4214138
    %v604 = vmul.f32 %v580, %v602
    %v605 = vmul.f32 %v595, %v603
    %v606 = vadd.f32 %v604, -0.28449672
    %v607 = vadd.f32 %v605, -0.28449672
    %v608 = vmul.f32 %v580, %v606
    %v609 = vmul.f32 %v595, %v607
    %v610 = vadd.f32 %v608, 0.2548296
    %v611 = vadd.f32 %v609, 0.2548296
    %v612 = vmul.f32 %v580, %v610
    %v613 = vmul.f32 %v595, %v611
    %v614 = vsub.f32 0.0, %v558
    %v615 = vsub.f32 0.0, %v559
    %v616 = vmul.f32 %v614, %v558
    %v617 = vmul.f32 %v615, %v559
    %v618 = vmul.f32 %v616, 1.442695
    %v619 = vpow.pop %v618
    %v620 = vmul.f32 %v617, 1.442695
    %v621 = vpow.pop %v620
    %v622 = vmul.f32 %v612, %v619
    %v623 = vmul.f32 %v613, %v621
    %v624 = vsub.f32 1.0, %v622
    %v625 = vsub.f32 1.0, %v623
    %vm626 = vcmp.ge.f32.partialorder %v558, 0.0
    %vm627 = vcmp.ge.f32.partialorder %v559, 0.0
    %v628 = vsub.f32 0.0, %v624
    %v629 = vsub.f32 0.0, %v625
    %v630 = vsel %vm626, %v624, %v628
    %v631 = vsel %vm627, %v625, %v629
    %v632 = vadd.f32 %v630, 1.0
    %v633 = vadd.f32 %v631, 1.0
    %v634 = vmul.f32 %v556, %v632
    %v635 = vmul.f32 %v557, %v633
    %v636 = vld [vmem:[%s6] sm:$0xff]
    %v637 = vld [vmem:[%s6 + $0x8] sm:$0xff]
    %v638 = vld [vmem:[%s6 + $0x10] sm:$0xff]
    %v639 = vld [vmem:[%s6 + $0x18] sm:$0xff]
    %v640 = vld [vmem:[%s6 + $0x20] sm:$0xff]
    %v641 = vld [vmem:[%s6 + $0x28] sm:$0xff]
    %v642 = vld [vmem:[%s6 + $0x30] sm:$0xff]
    %v643 = vld [vmem:[%s6 + $0x38] sm:$0xff]
    %v644 = vld [vmem:[%s6 + $0x40] sm:$0xff]
    %v645 = vld [vmem:[%s6 + $0x48] sm:$0xff]
    %v646 = vld [vmem:[%s6 + $0x50] sm:$0xff]
    %v647 = vld [vmem:[%s6 + $0x58] sm:$0xff]
    %v648 = vld [vmem:[%s6 + $0x60] sm:$0xff]
    %v649 = vld [vmem:[%s6 + $0x68] sm:$0xff]
    %v650 = vld [vmem:[%s6 + $0x70] sm:$0xff]
    %v651 = vld [vmem:[%s6 + $0x78] sm:$0xff]
    %652 = vmatpush.msra.mxu0 %v651
    %653 = vmatpush.msra.mxu0 %v650
    %654 = vmatpush.msra.mxu0 %v649
    %655 = vmatpush.msra.mxu0 %v648
    %656 = vmatpush.msra.mxu0 %v647
    %657 = vmatpush.msra.mxu0 %v646
    %658 = vmatpush.msra.mxu0 %v645
    %659 = vmatpush.msra.mxu0 %v644
    %660 = vmatpush.msra.mxu0 %v643
    %661 = vmatpush.msra.mxu0 %v642
    %662 = vmatpush.msra.mxu0 %v641
    %663 = vmatpush.msra.mxu0 %v640
    %664 = vmatpush.msra.mxu0 %v639
    %665 = vmatpush.msra.mxu0 %v638
    %666 = vmatpush.msra.mxu0 %v637
    %667 = vmatpush.msra.mxu0 %v636
    %668 = vmatmul.f32.gmra.mxu0 %v634
    %v669 = vpop.f32.mrf.mxu0
    %v670 = vadd.f32 0.0, %v669
    %671 = vmatmul.f32.gmra.mxu0 %v635
    %v672 = vpop.f32.mrf.mxu0
    %v673 = vadd.f32 0.0, %v672
    %674 = vdwg.mxu0
    %v675 = vadd.f32 %v471, %v670
    %v676 = vadd.f32 %v472, %v673
    %677 = vst.msk [vmem:[#allocation2] sm:$0xff] %vm30, %v675
    %678 = vst.msk [vmem:[#allocation2 + $0x8] sm:$0xff] %vm30, %v676
    // Predicated region
    $region30: #{tpu_custom_call.1} parent=1 // pred_check
      _
    $region31: #{tpu_custom_call.1} parent=1 // pred_check_branch
      %680 = sbr.rel (0) target = $region33
    $region32: #{tpu_custom_call.1} parent=1 // pred_region
      %682 = vsyncadd [#allocation3], 0
      %s683 = sshll.u32 [#allocation2], 4
      %s684 = int_to_ptr.vmem [resolvable:$true] %s683
      %s685 = sshll.u32 %s7, 4
      %s686 = int_to_ptr.hbm [resolvable:$true] %s685
      %691 = dma.vmem_to_hbm [thread:$0]  %s684, 256, %s686, [#allocation3], 128, 128, 8
    $region33: #{tpu_custom_call.1} parent=1 // pred_fallthru
      _
    // Predicated region
    $region34: #{tpu_custom_call.1} parent=1 // pred_check
      _
    $region35: #{tpu_custom_call.1} parent=1 // pred_check_branch
      %693 = sbr.rel (0) target = $region37
    $region36: #{tpu_custom_call.1} parent=1 // pred_region
      %695 = dma.done [#allocation3], 256
    $region37: #{tpu_custom_call.1} parent=1 // pred_fallthru
      _
    %696 = vsyncpa [#allocation3], 1

</llo_original>
